<compile_context>
chip_gen: v7x
topology: tpu7x:2x2x1
jax: 0.10.0
libtpu: 0.0.40
codegen_flags: <defaults>
</compile_context>

<pallas_src>
import functools
import math

import jax
import jax.numpy as jnp
from jax.experimental import pallas as pl
from jax.experimental.pallas import tpu as pltpu

_TM_CAP = 256                    # batch rows per block (fused path needs batch <= this)
_TN_CAP = 512                    # output columns per block
_TK_CAP = 1536                   # contraction elems per block (one block => no K padding)
_VMEM_LIMIT = 40 * 1024 * 1024   # explicit: > v5e 16 MiB default, < v7x 64 MiB physical


def _round_up(x, m):
    return (x + m - 1) // m * m


def _stable_softplus(x):
    # log(1 + exp(x)) without overflow (matches torch.nn.functional.softplus /
    # the reference _log_to_std).
    return jnp.maximum(x, 0.0) + jnp.log1p(jnp.exp(-jnp.abs(x)))


# ---------------------------------------------------------------------------
# Tiling choices (pad nothing except K, and K only when it must be tiled)
# ---------------------------------------------------------------------------
def _pick_k_tiling(n_in):
    """Return (tk, padded_k).  K stays untouched (single block, no padding)
    whenever it fits _TK_CAP; otherwise zero-pad to the next 128 multiple and
    tile with the largest 128-multiple that divides it exactly (so no block
    ever reads out of bounds along the reduction)."""
    if n_in <= _TK_CAP:
        return n_in, n_in
    kp = _round_up(n_in, 128)
    q = kp // 128
    tk = 128
    for d in range(1, q + 1):
        if q % d == 0 and d * 128 <= _TK_CAP:
            tk = d * 128
    return tk, kp


def _pick_n_tiling(n_out):
    """Lane-dense N tiles.  Small layers keep one full-width block; large
    layers split into >=2 128-multiple tiles so both v7x TensorCores get work
    (near-zero cost on single-core v5e/v6e)."""
    np128 = _round_up(n_out, 128)
    if np128 < 512:
        return n_out
    nsplit = max(2, pl.cdiv(np128, _TN_CAP))
    return min(_TN_CAP, _round_up(pl.cdiv(np128, nsplit), 128))


# ---------------------------------------------------------------------------
# Kernels
# ---------------------------------------------------------------------------
def _fused_kernel(x_ref, wmu_ref, wrho_ref, eps_ref, b_ref, o_ref, *, mm_dtype):
    """out (+)= X @ (mu + softplus(rho)*eps); bias folded into the k==0 init.
    Output block is resident across the K axis -> accumulate into o_ref."""
    k = pl.program_id(1)
    w = wmu_ref[...] + _stable_softplus(wrho_ref[...]) * eps_ref[...]
    acc = jnp.dot(x_ref[...].astype(mm_dtype), w.astype(mm_dtype),
                  preferred_element_type=jnp.float32)

    @pl.when(k == 0)
    def _():
        o_ref[...] = acc + b_ref[...]

    @pl.when(k > 0)
    def _():
        o_ref[...] += acc


def _matmul_bias_kernel(x_ref, w_ref, b_ref, o_ref, *, mm_dtype):
    """out (+)= X @ W, bias folded into the k==0 init (infer / two-pass path)."""
    k = pl.program_id(2)
    acc = jnp.dot(x_ref[...].astype(mm_dtype), w_ref[...].astype(mm_dtype),
                  preferred_element_type=jnp.float32)

    @pl.when(k == 0)
    def _():
        o_ref[...] = acc + b_ref[...]

    @pl.when(k > 0)
    def _():
        o_ref[...] += acc


def _reparam_kernel(mu_ref, rho_ref, eps_ref, o_ref):
    """W = mu + softplus(rho)*eps, emitted in the (compact) matmul dtype."""
    w = mu_ref[...] + _stable_softplus(rho_ref[...]) * eps_ref[...]
    o_ref[...] = w.astype(o_ref.dtype)


# ---------------------------------------------------------------------------
# pallas_call wrappers
# ---------------------------------------------------------------------------
def _fused_forward(x, w_mu, w_rho, eps_w, b_row, batch, n_out, tn, tk, mm_dtype):
    kp = x.shape[1]                      # possibly K-padded
    nb, kb = pl.cdiv(n_out, tn), kp // tk
    w_spec = pl.BlockSpec((tk, tn), lambda j, k: (k, j))
    return pl.pallas_call(
        functools.partial(_fused_kernel, mm_dtype=mm_dtype),
        out_shape=jax.ShapeDtypeStruct((batch, n_out), jnp.float32),
        grid=(nb, kb),
        in_specs=[pl.BlockSpec((batch, tk), lambda j, k: (0, k)),   # X
                  w_spec, w_spec, w_spec,                            # mu, rho, eps
                  pl.BlockSpec((1, tn), lambda j, k: (0, j))],       # bias row
        out_specs=pl.BlockSpec((batch, tn), lambda j, k: (0, j)),
        compiler_params=pltpu.CompilerParams(
            dimension_semantics=("parallel", "arbitrary"),
            vmem_limit_bytes=_VMEM_LIMIT),
    )(x, w_mu, w_rho, eps_w, b_row)


def _matmul_bias(x, w, b_row, batch, n_out, tm, tn, tk, mm_dtype):
    kp = x.shape[1]
    mb, nb, kb = pl.cdiv(batch, tm), pl.cdiv(n_out, tn), kp // tk
    return pl.pallas_call(
        functools.partial(_matmul_bias_kernel, mm_dtype=mm_dtype),
        out_shape=jax.ShapeDtypeStruct((batch, n_out), jnp.float32),
        grid=(mb, nb, kb),
        in_specs=[pl.BlockSpec((tm, tk), lambda i, j, k: (i, k)),
                  pl.BlockSpec((tk, tn), lambda i, j, k: (k, j)),
                  pl.BlockSpec((1, tn), lambda i, j, k: (0, j))],
        out_specs=pl.BlockSpec((tm, tn), lambda i, j, k: (i, j)),
        compiler_params=pltpu.CompilerParams(
            dimension_semantics=("parallel", "parallel", "arbitrary"),
            vmem_limit_bytes=_VMEM_LIMIT),
    )(x, w, b_row)


def _reparam(w_mu, w_rho, eps_w, out_dtype):
    rows, cols = w_mu.shape
    tr = rows if rows <= 512 else 512
    tc = cols if cols <= 1024 else 1024
    spec = pl.BlockSpec((tr, tc), lambda i, j: (i, j))
    return pl.pallas_call(
        _reparam_kernel,
        out_shape=jax.ShapeDtypeStruct((rows, cols), out_dtype),
        grid=(pl.cdiv(rows, tr), pl.cdiv(cols, tc)),
        in_specs=[spec, spec, spec],
        out_specs=spec,
        compiler_params=pltpu.CompilerParams(
            dimension_semantics=("parallel", "parallel"),
            vmem_limit_bytes=_VMEM_LIMIT),
    )(w_mu, w_rho, eps_w)


# ---------------------------------------------------------------------------
# BNNLayer.forward
# ---------------------------------------------------------------------------
def bnn_layer_forward(x, w_mu, w_rho, b_mu, b_rho, eps_w=None, eps_b=None, *,
                      infer=False, matmul_dtype=jnp.bfloat16):
    """Pallas implementation of BNNLayer.forward.

    stochastic (infer=False):
        out = X @ (W_mu + softplus(W_rho)*eps_W) + (b_mu + softplus(b_rho)*eps_b)
    inference (infer=True):
        out = X @ W_mu + b_mu       (rho / eps tensors are never read or DMA'd)

    The MXU runs in `matmul_dtype` (bf16 default, f32 accumulation everywhere);
    pass jnp.float32 for the full-precision path.
    """
    f32 = jnp.float32
    x = x.astype(f32)
    batch, n_in = x.shape
    n_out = w_mu.shape[1]

    # ---- bias (tiny): plain jnp, folded into the k==0 accumulator init ----
    if infer:
        b_row = b_mu.astype(f32).reshape(1, n_out)
    else:
        b_row = (b_mu.astype(f32)
                 + _stable_softplus(b_rho.astype(f32)) * eps_b.astype(f32)
                 ).reshape(1, n_out)

    # ---- tiling: only K is ever padded, and only when it must be tiled ----
    tk, kp = _pick_k_tiling(n_in)
    tn = _pick_n_tiling(n_out)
    tm = batch if batch <= _TM_CAP else _TM_CAP

    if kp != n_in:
        # K-tiled reduction needs zero padding (padded eps/mu/x are all zero,
        # so padded W rows contribute exactly zero).
        x = jnp.pad(x, ((0, 0), (0, kp - n_in)))
        pad_w = lambda a: jnp.pad(a.astype(f32), ((0, kp - n_in), (0, 0)))
    else:
        pad_w = lambda a: a.astype(f32)

    if infer:
        # Dedicated inference path: only the mu parameters are touched.
        return _matmul_bias(x, pad_w(w_mu), b_row, batch, n_out,
                            tm, tn, tk, matmul_dtype)

    if batch <= _TM_CAP:
        # Common BNN case: one M block -> fuse reparameterization into the
        # matmul (softplus work stays O(K*N); W never round-trips HBM).
        return _fused_forward(x, pad_w(w_mu), pad_w(w_rho), pad_w(eps_w),
                              b_row, batch, n_out, tn, tk, matmul_dtype)

    # Large batch: reparameterize once (emitting the compact matmul dtype) so
    # softplus is not recomputed for every M block, then tiled matmul.
    w = _reparam(pad_w(w_mu), pad_w(w_rho), pad_w(eps_w), matmul_dtype)
    return _matmul_bias(x, w, b_row, batch, n_out, tm, tn, tk, matmul_dtype)


# ---------------------------------------------------------------------------
# Self-test
# ---------------------------------------------------------------------------
def _std_to_log(std):
    # inverse-softplus, matches the PyTorch _std_to_log
    return math.log(math.exp(std) - 1.0)


def _make_inputs(key, n_inputs, n_outputs, batch, prior_std=0.5):
    kx, kwmu, kew, keb = jax.random.split(key, 4)
    x = jax.random.normal(kx, (batch, n_inputs), dtype=jnp.float32)
    w_mu = 0.2 * jax.random.normal(kwmu, (n_inputs, n_outputs), dtype=jnp.float32)
    w_rho = jnp.full((n_inputs, n_outputs), _std_to_log(prior_std), jnp.float32)
    b_mu = jnp.zeros((n_outputs,), jnp.float32)
    b_rho = jnp.full((n_outputs,), _std_to_log(prior_std), jnp.float32)
    eps_w = jax.random.normal(kew, (n_inputs, n_outputs), dtype=jnp.float32)
    eps_b = jax.random.normal(keb, (n_outputs,), dtype=jnp.float32)
    return x, w_mu, w_rho, b_mu, b_rho, eps_w, eps_b


def _reference(x, w_mu, w_rho, b_mu, b_rho, eps_w, eps_b):
    sp = lambda r: jnp.logaddexp(0.0, r)     # stable softplus
    w = w_mu + sp(w_rho) * eps_w
    b = b_mu + sp(b_rho) * eps_b
    hi = jax.lax.Precision.HIGHEST
    return (jnp.dot(x, w, precision=hi) + b[None, :],
            jnp.dot(x, w_mu, precision=hi) + b_mu[None, :])


if __name__ == "__main__":
    F32_TOL = dict(atol=1e-3, rtol=1e-3)     # f32 MXU vs HIGHEST-precision ref
    BF16_TOL = dict(atol=3e-1, rtol=2e-2)    # bf16 MXU (f32 accumulation)

    def check(name, got, ref, tol):
        got = jax.block_until_ready(got)
        ok = jnp.allclose(got, ref, **tol)
        assert ok, f"{name}: max abs err {float(jnp.max(jnp.abs(got - ref)))}"

    cases = [
        # (name, n_in, n_out, batch) — each exercises a different grid / path
        ("tiny 32->16 b8    (fused, single block)",          32,   16,   8),
        ("mid  600->300 b40 (fused, full-dim blocks)",       600,  300,  40),
        ("wide 600->700 b16 (fused, 2 lane-dense N tiles)",  600,  700,  16),
        ("big  1800->200 b600 (two-pass, tiled M and K)",    1800, 200,  600),
    ]
    keys = jax.random.split(jax.random.PRNGKey(0), len(cases))
    for kcase, (name, n_in, n_out, batch) in zip(keys, cases):
        args = _make_inputs(kcase, n_in, n_out, batch)
        ref, ref_inf = _reference(*args)
        # default bf16 MXU path (f32 accumulation)
        check(name + " [bf16]", bnn_layer_forward(*args), ref, BF16_TOL)
        # full-precision f32 path
        check(name + " [f32]",
              bnn_layer_forward(*args, matmul_dtype=jnp.float32), ref, F32_TOL)
        # dedicated inference path (only mu parameters are read)
        check(name + " [infer]",
              bnn_layer_forward(*args[:5], infer=True, matmul_dtype=jnp.float32),
              ref_inf, F32_TOL)

    print("KERNEL_OK")
</pallas_src>

<mosaic_0001>
module attributes {stable_mosaic.version = 11 : i64} {
  func.func @_fused_kernel(%arg0: i32, %arg1: i32, %arg2: memref<8x32xf32, #tpu.memory_space<vmem>>, %arg3: memref<32x16xf32, #tpu.memory_space<vmem>>, %arg4: memref<32x16xf32, #tpu.memory_space<vmem>>, %arg5: memref<32x16xf32, #tpu.memory_space<vmem>>, %arg6: memref<1x16xf32, #tpu.memory_space<vmem>>, %arg7: memref<8x16xf32, #tpu.memory_space<vmem>>) attributes {dimension_semantics = [#tpu.dimension_semantics<parallel>, #tpu.dimension_semantics<arbitrary>], iteration_bounds = array<i64: 1, 1>, scalar_prefetch = 0 : i64, scratch_operands = 0 : i64, tpu.core_type = #tpu.core_type<tc>, window_params = [{transform_indices = @transform_0, window_bounds = array<i64: 8, 32>}, {transform_indices = @transform_1, window_bounds = array<i64: 32, 16>}, {transform_indices = @transform_2, window_bounds = array<i64: 32, 16>}, {transform_indices = @transform_3, window_bounds = array<i64: 32, 16>}, {transform_indices = @transform_4, window_bounds = array<i64: 1, 16>}, {transform_indices = @transform_5, window_bounds = array<i64: 8, 16>}]} {
    %c0 = arith.constant 0 : index
    %c0_0 = arith.constant 0 : index
    %0 = vector.load %arg3[%c0, %c0_0] : memref<32x16xf32, #tpu.memory_space<vmem>>, vector<32x16xf32>
    %c0_1 = arith.constant 0 : index
    %c0_2 = arith.constant 0 : index
    %1 = vector.load %arg4[%c0_1, %c0_2] : memref<32x16xf32, #tpu.memory_space<vmem>>, vector<32x16xf32>
    %cst = arith.constant 0.000000e+00 : f32
    %2 = vector.broadcast %cst : f32 to vector<32x16xf32>
    %3 = arith.maximumf %1, %2 : vector<32x16xf32>
    %4 = math.absf %1 : vector<32x16xf32>
    %cst_3 = arith.constant 0.000000e+00 : f32
    %5 = vector.broadcast %cst_3 : f32 to vector<32x16xf32>
    %6 = arith.subf %5, %4 : vector<32x16xf32>
    %7 = math.exp %6 : vector<32x16xf32>
    %8 = math.log1p %7 : vector<32x16xf32>
    %9 = arith.addf %3, %8 : vector<32x16xf32>
    %c0_4 = arith.constant 0 : index
    %c0_5 = arith.constant 0 : index
    %10 = vector.load %arg5[%c0_4, %c0_5] : memref<32x16xf32, #tpu.memory_space<vmem>>, vector<32x16xf32>
    %11 = arith.mulf %9, %10 : vector<32x16xf32>
    %12 = arith.addf %0, %11 : vector<32x16xf32>
    %c0_6 = arith.constant 0 : index
    %c0_7 = arith.constant 0 : index
    %13 = vector.load %arg2[%c0_6, %c0_7] : memref<8x32xf32, #tpu.memory_space<vmem>>, vector<8x32xf32>
    %14 = arith.truncf %13 : vector<8x32xf32> to vector<8x32xbf16>
    %15 = arith.truncf %12 : vector<32x16xf32> to vector<32x16xbf16>
    %cst_8 = arith.constant dense<0.000000e+00> : vector<8x16xf32>
    %16 = tpu.matmul %14, %15, %cst_8 {dimension_numbers = #tpu.dot_dimension_numbers<[1], [0], [0], [1], [0, 0, 1, 1], [], []>} : vector<8x32xbf16>, vector<32x16xbf16>, vector<8x16xf32> -> vector<8x16xf32>
    %c0_i32 = arith.constant 0 : i32
    %17 = arith.cmpi eq, %arg1, %c0_i32 : i32
    %18 = arith.extui %17 : i1 to i32
    %c0_i32_9 = arith.constant 0 : i32
    %19 = arith.cmpi ne, %18, %c0_i32_9 : i32
    scf.if %19 {
      %c0_12 = arith.constant 0 : index
      %c0_13 = arith.constant 0 : index
      %23 = vector.load %arg6[%c0_12, %c0_13] : memref<1x16xf32, #tpu.memory_space<vmem>>, vector<1x16xf32>
      %24 = vector.broadcast %23 : vector<1x16xf32> to vector<8x16xf32>
      %25 = arith.addf %16, %24 : vector<8x16xf32>
      %c0_14 = arith.constant 0 : index
      %c0_15 = arith.constant 0 : index
      %26 = vector.load %arg7[%c0_14, %c0_15] : memref<8x16xf32, #tpu.memory_space<vmem>>, vector<8x16xf32>
      tpu.vector_store %arg7[%c0_14, %c0_15], %25 {strides = array<i32>} : memref<8x16xf32, #tpu.memory_space<vmem>>, vector<8x16xf32>,
    } else {
    }
    %c0_i32_10 = arith.constant 0 : i32
    %20 = arith.cmpi sgt, %arg1, %c0_i32_10 : i32
    %21 = arith.extui %20 : i1 to i32
    %c0_i32_11 = arith.constant 0 : i32
    %22 = arith.cmpi ne, %21, %c0_i32_11 : i32
    scf.if %22 {
      %c0_12 = arith.constant 0 : index
      %c0_13 = arith.constant 0 : index
      %23 = vector.load %arg7[%c0_12, %c0_13] : memref<8x16xf32, #tpu.memory_space<vmem>>, vector<8x16xf32>
      %24 = arith.addf %23, %16 : vector<8x16xf32>
      %c0_14 = arith.constant 0 : index
      %c0_15 = arith.constant 0 : index
      %25 = vector.load %arg7[%c0_14, %c0_15] : memref<8x16xf32, #tpu.memory_space<vmem>>, vector<8x16xf32>
      tpu.vector_store %arg7[%c0_14, %c0_15], %24 {strides = array<i32>} : memref<8x16xf32, #tpu.memory_space<vmem>>, vector<8x16xf32>,
    } else {
    }
    return
  }
  func.func @transform_0(%arg0: i32, %arg1: i32) -> (i32, i32) {
    %c0_i32 = arith.constant 0 : i32
    %c0_i32_0 = arith.constant 0 : i32
    return %c0_i32, %arg1 : i32, i32
  }
  func.func @transform_1(%arg0: i32, %arg1: i32) -> (i32, i32) {
    %c0_i32 = arith.constant 0 : i32
    return %arg1, %arg0 : i32, i32
  }
  func.func @transform_2(%arg0: i32, %arg1: i32) -> (i32, i32) {
    %c0_i32 = arith.constant 0 : i32
    return %arg1, %arg0 : i32, i32
  }
  func.func @transform_3(%arg0: i32, %arg1: i32) -> (i32, i32) {
    %c0_i32 = arith.constant 0 : i32
    return %arg1, %arg0 : i32, i32
  }
  func.func @transform_4(%arg0: i32, %arg1: i32) -> (i32, i32) {
    %c0_i32 = arith.constant 0 : i32
    %c0_i32_0 = arith.constant 0 : i32
    return %c0_i32, %arg0 : i32, i32
  }
  func.func @transform_5(%arg0: i32, %arg1: i32) -> (i32, i32) {
    %c0_i32 = arith.constant 0 : i32
    %c0_i32_0 = arith.constant 0 : i32
    return %c0_i32, %arg0 : i32, i32
  }
}

</mosaic_0001>

<llo_original>
// kernel: tpu_custom_call.1
$region0: #{tpu_custom_call.1}
  #allocation0 [shape = 'u32[]', space=smem, size = 0x4, offset = 0x4, fixed_abs, tag = 'smem constant byte address 0x4 - core index']
  #allocation1 [shape = 'u32[144,128]{1,0:T(1,128)}', space=vmem, size = 0x12000, scoped, tag = 'internal scratch']
  %s0 = inlined_call_operand.vmem [shape: f32[8,32], index: 0, kind: input, shape index: {}]
  %s1 = inlined_call_operand.vmem [shape: f32[32,16], index: 1, kind: input, shape index: {}]
  %s2 = inlined_call_operand.vmem [shape: f32[32,16], index: 2, kind: input, shape index: {}]
  %s3 = inlined_call_operand.vmem [shape: f32[32,16], index: 3, kind: input, shape index: {}]
  %s4 = inlined_call_operand.vmem [shape: f32[1,16], index: 4, kind: input, shape index: {}]
  %s5 = inlined_call_operand.hbm [shape: f32[8,16], index: 5, kind: output, shape index: {}]
  %s6 = sld [smem:[#allocation0]]
  $region38: #{tpu_custom_call.1} parent=0
    _
  %s8 = ssub.s32 1, %s6
  %s9 = scalar_select 0, %s8, %s6
  $region1: #{tpu_custom_call.1} parent=0
    #allocation2 [shape = 'u8[4096]{0}', space=vmem, size = 0x1000, scoped, tag = 'output window, operand 0, single buffered']
    #allocation3 [shape = 's32[1]{0}', space=sflag, size = 0x4, scoped, tag = 'scoped memory for tpu_custom_call.1']
    %10 = vsyncpa [#allocation3], 0
    // Predicated region
    $region2: #{tpu_custom_call.1} parent=1 // pred_check
      _
    $region3: #{tpu_custom_call.1} parent=1 // pred_check_branch
      %12 = sbr.rel (0) target = $region5
    $region4: #{tpu_custom_call.1} parent=1 // pred_region
      _
    $region5: #{tpu_custom_call.1} parent=1 // pred_fallthru
      _
    // Predicated region
    $region6: #{tpu_custom_call.1} parent=1 // pred_check
      _
    $region7: #{tpu_custom_call.1} parent=1 // pred_check_branch
      %14 = sbr.rel (0) target = $region9
    $region8: #{tpu_custom_call.1} parent=1 // pred_region
      _
    $region9: #{tpu_custom_call.1} parent=1 // pred_fallthru
      _
    // Predicated region
    $region10: #{tpu_custom_call.1} parent=1 // pred_check
      _
    $region11: #{tpu_custom_call.1} parent=1 // pred_check_branch
      %16 = sbr.rel (0) target = $region13
    $region12: #{tpu_custom_call.1} parent=1 // pred_region
      _
    $region13: #{tpu_custom_call.1} parent=1 // pred_fallthru
      _
    // Predicated region
    $region14: #{tpu_custom_call.1} parent=1 // pred_check
      _
    $region15: #{tpu_custom_call.1} parent=1 // pred_check_branch
      %18 = sbr.rel (0) target = $region17
    $region16: #{tpu_custom_call.1} parent=1 // pred_region
      _
    $region17: #{tpu_custom_call.1} parent=1 // pred_fallthru
      _
    // Predicated region
    $region18: #{tpu_custom_call.1} parent=1 // pred_check
      _
    $region19: #{tpu_custom_call.1} parent=1 // pred_check_branch
      %20 = sbr.rel (0) target = $region21
    $region20: #{tpu_custom_call.1} parent=1 // pred_region
      _
    $region21: #{tpu_custom_call.1} parent=1 // pred_fallthru
      _
    %v22 = vld [vmem:[%s1] sm:$0xff]
    %v23 = vld [vmem:[%s1 + $0x8] sm:$0xff]
    %v24 = vld [vmem:[%s1 + $0x10] sm:$0xff]
    %v25 = vld [vmem:[%s1 + $0x18] sm:$0xff]
    %v26 = vld [vmem:[%s2] sm:$0xff]
    %v27 = vld [vmem:[%s2 + $0x8] sm:$0xff]
    %v28 = vld [vmem:[%s2 + $0x10] sm:$0xff]
    %v29 = vld [vmem:[%s2 + $0x18] sm:$0xff]
    %v30 = vmax.f32 %v26, 0.0
    %v31 = vmax.f32 %v27, 0.0
    %v32 = vmax.f32 %v28, 0.0
    %v33 = vmax.f32 %v29, 0.0
    %v34 = vand.u32 2147483647, %v26
    %v35 = vand.u32 2147483647, %v27
    %v36 = vand.u32 2147483647, %v28
    %v37 = vand.u32 2147483647, %v29
    %v38 = vsub.f32 0.0, %v34
    %v39 = vsub.f32 0.0, %v35
    %v40 = vsub.f32 0.0, %v36
    %v41 = vsub.f32 0.0, %v37
    %v42 = vmul.f32 %v38, 1.442695
    %v43 = vpow.pop %v42
    %v44 = vmul.f32 %v39, 1.442695
    %v45 = vpow.pop %v44
    %v46 = vmul.f32 %v40, 1.442695
    %v47 = vpow.pop %v46
    %v48 = vmul.f32 %v41, 1.442695
    %v49 = vpow.pop %v48
    %v50 = vadd.f32 %v43, 1.0
    %v51 = vlog2.pop %v50
    %v52 = vmul.f32 %v51, 0.6931472
    %v53 = vmul.f32 -0.5, %v43
    %v54 = vadd.f32 %v53, 1.0
    %v55 = vmul.f32 %v54, %v43
    %v56 = vand.u32 2147483647, %v43
    %vm57 = vcmp.lt.f32.partialorder %v56, 0.0004427343
    %v58 = vsel %vm57, %v55, %v52
    %v59 = vadd.f32 %v45, 1.0
    %v60 = vlog2.pop %v59
    %v61 = vmul.f32 %v60, 0.6931472
    %v62 = vmul.f32 -0.5, %v45
    %v63 = vadd.f32 %v62, 1.0
    %v64 = vmul.f32 %v63, %v45
    %v65 = vand.u32 2147483647, %v45
    %vm66 = vcmp.lt.f32.partialorder %v65, 0.0004427343
    %v67 = vsel %vm66, %v64, %v61
    %v68 = vadd.f32 %v47, 1.0
    %v69 = vlog2.pop %v68
    %v70 = vmul.f32 %v69, 0.6931472
    %v71 = vmul.f32 -0.5, %v47
    %v72 = vadd.f32 %v71, 1.0
    %v73 = vmul.f32 %v72, %v47
    %v74 = vand.u32 2147483647, %v47
    %vm75 = vcmp.lt.f32.partialorder %v74, 0.0004427343
    %v76 = vsel %vm75, %v73, %v70
    %v77 = vadd.f32 %v49, 1.0
    %v78 = vlog2.pop %v77
    %v79 = vmul.f32 %v78, 0.6931472
    %v80 = vmul.f32 -0.5, %v49
    %v81 = vadd.f32 %v80, 1.0
    %v82 = vmul.f32 %v81, %v49
    %v83 = vand.u32 2147483647, %v49
    %vm84 = vcmp.lt.f32.partialorder %v83, 0.0004427343
    %v85 = vsel %vm84, %v82, %v79
    %v86 = vadd.f32 %v30, %v58
    %v87 = vadd.f32 %v31, %v67
    %v88 = vadd.f32 %v32, %v76
    %v89 = vadd.f32 %v33, %v85
    %v90 = vld [vmem:[%s3] sm:$0xff]
    %v91 = vld [vmem:[%s3 + $0x8] sm:$0xff]
    %v92 = vld [vmem:[%s3 + $0x10] sm:$0xff]
    %v93 = vld [vmem:[%s3 + $0x18] sm:$0xff]
    %v94 = vmul.f32 %v86, %v90
    %v95 = vmul.f32 %v87, %v91
    %v96 = vmul.f32 %v88, %v92
    %v97 = vmul.f32 %v89, %v93
    %v98 = vadd.f32 %v22, %v94
    %v99 = vadd.f32 %v23, %v95
    %v100 = vadd.f32 %v24, %v96
    %v101 = vadd.f32 %v25, %v97
    %v102 = vld [vmem:[%s0] sm:$0xff]
    %v103 = vpack.c.bf16 %v102, %v102
    %v104 = vpack.c.bf16 %v99, %v98
    %v105 = vpack.c.bf16 %v101, %v100
    %vm106 = vcmask 261120
    %v108 = vsel %vm106, %v103, 0
    %110 = vmatprep.subr.bf16.mxu0 0
    %111 = vmatpush1.bf16.msra.mxu0 %v104
    %112 = vmatprep.subr.bf16.mxu0 0
    %113 = vmatpush1.bf16.msra.mxu0 %v105
    %114 = vmatprep.subr.bf16.mxu0 0
    %115 = vmatpush1.bf16.msra.mxu0 0
    %116 = vmatprep.subr.bf16.mxu0 0
    %117 = vmatpush1.bf16.msra.mxu0 0
    %118 = vmatprep.subr.bf16.mxu0 0
    %119 = vmatpush1.bf16.msra.mxu0 0
    %120 = vmatprep.subr.bf16.mxu0 0
    %121 = vmatpush1.bf16.msra.mxu0 0
    %122 = vmatprep.subr.bf16.mxu0 0
    %123 = vmatpush1.bf16.msra.mxu0 0
    %124 = vmatprep.subr.bf16.mxu0 0
    %125 = vmatpush1.bf16.msra.mxu0 0
    %126 = vmatprep.subr.bf16.mxu0 0
    %127 = vmatpush1.bf16.msra.mxu0 0
    %128 = vmatprep.subr.bf16.mxu0 0
    %129 = vmatpush1.bf16.msra.mxu0 0
    %130 = vmatprep.subr.bf16.mxu0 0
    %131 = vmatpush1.bf16.msra.mxu0 0
    %132 = vmatprep.subr.bf16.mxu0 0
    %133 = vmatpush1.bf16.msra.mxu0 0
    %134 = vmatprep.subr.bf16.mxu0 0
    %135 = vmatpush1.bf16.msra.mxu0 0
    %136 = vmatprep.subr.bf16.mxu0 0
    %137 = vmatpush1.bf16.msra.mxu0 0
    %138 = vmatprep.subr.bf16.mxu0 0
    %139 = vmatpush1.bf16.msra.mxu0 0
    %140 = vmatprep.subr.bf16.mxu0 0
    %141 = vmatpush1.bf16.msra.mxu0 0
    %142 = vmatprep.mubr.bf16.mxu0 0
    %143 = vmatmul.mubr.bf16.gmra.mrb[0].mxu0 %v108
    %v144 = vpop.f32.mrb[0].mxu0
    %v145 = vadd.f32 0.0, %v144
    %v146 = vpop.f32.mrb[0].mxu0
    %v147 = vpop.f32.mrb[0].mxu0
    %v148 = vpop.f32.mrb[0].mxu0
    %149 = vdwg.mxu0
    %p150 = scmp.eq.s32.totalorder 0, 0
    // Predicated region
    $region22: #{tpu_custom_call.1} parent=1 // pred_check
      %p151 = pneg %p150
    $region23: #{tpu_custom_call.1} parent=1 // pred_check_branch
      %153 = sbr.rel (%p151) target = $region25
    $region24: #{tpu_custom_call.1} parent=1 // pred_region
      %v154 = vld [vmem:[%s4] sm:$0x1]
      %v156 = vlaneseq
      %v157 = vshrl.u32 %v156, 7
      %v158 = vsub.s32 0, %v157
      %v159 = vrot.slane %v154, %v158
      %v161 = vadd.f32 %v145, %v159
      %vm162 = vcmask 130048
      %163 = vst.msk [vmem:[#allocation2] sm:$0xff] %vm162, %v161
    $region25: #{tpu_custom_call.1} parent=1 // pred_fallthru
      _
    %p164 = scmp.gt.s32.totalorder 0, 0
    // Predicated region
    $region26: #{tpu_custom_call.1} parent=1 // pred_check
      %p165 = pneg %p164
    $region27: #{tpu_custom_call.1} parent=1 // pred_check_branch
      %167 = sbr.rel (%p165) target = $region29
    $region28: #{tpu_custom_call.1} parent=1 // pred_region
      %v168 = vld [vmem:[#allocation2] sm:$0xff]
      %v169 = vadd.f32 %v168, %v145
      %vm170 = vcmask 130048
      %171 = vst.msk [vmem:[#allocation2] sm:$0xff] %vm170, %v169
    $region29: #{tpu_custom_call.1} parent=1 // pred_fallthru
      _
    // Predicated region
    $region30: #{tpu_custom_call.1} parent=1 // pred_check
      _
    $region31: #{tpu_custom_call.1} parent=1 // pred_check_branch
      %173 = sbr.rel (0) target = $region33
    $region32: #{tpu_custom_call.1} parent=1 // pred_region
      %s175 = ssub.s32 128, 128
      %176 = vsyncadd [#allocation3], %s175
      %s178 = sshll.u32 [#allocation2], 4
      %s179 = int_to_ptr.vmem [resolvable:$true] %s178
      %181 = dma.vmem_to_hbm [thread:$0]  %s179, 128, %s5, [#allocation3]
    $region33: #{tpu_custom_call.1} parent=1 // pred_fallthru
      _
    // Predicated region
    $region34: #{tpu_custom_call.1} parent=1 // pred_check
      _
    $region35: #{tpu_custom_call.1} parent=1 // pred_check_branch
      %183 = sbr.rel (0) target = $region37
    $region36: #{tpu_custom_call.1} parent=1 // pred_region
      %184 = dma.done [#allocation3], 128
    $region37: #{tpu_custom_call.1} parent=1 // pred_fallthru
      _
    %185 = vsyncpa [#allocation3], 1

</llo_original>
